<compile_context>
chip_gen: v5e
topology: v5e:2x2
jax: 0.10.0
libtpu: 0.0.40
codegen_flags: <defaults>
</compile_context>

<pallas_src>
import jax
import jax.numpy as jnp
from jax.experimental import pallas as pl
from jax.experimental.pallas import tpu as pltpu

_LANE = 128


def _scale_kernel(w_ref, x_ref, o_ref):
    # w_ref: (1, 1) f32 scalar in SMEM; x_ref/o_ref: (TM, Nw) tile in VMEM.
    s = w_ref[0, 0].astype(x_ref.dtype)       # multiply in the input dtype
    o_ref[...] = (x_ref[...] * s).astype(o_ref.dtype)


def _chip_config():
    """Chip-aware (target_block_bytes, vmem_limit_bytes-or-None)."""
    kind = ""
    try:
        kind = jax.devices()[0].device_kind.lower()
    except Exception:
        pass
    if "v7" in kind:
        # v7x: 3.2 TB/s HBM, 64 MiB physical VMEM -> bigger blocks, raise scoped limit.
        return 6 * 1024 * 1024, 48 << 20
    if "v6" in kind:
        # v6e: 4 MiB blocks fit the 32 MiB default scoped VMEM with double buffering.
        return 4 * 1024 * 1024, None
    # v5e (16 MiB default scoped VMEM) and unknown chips: conservative 2 MiB blocks.
    return 2 * 1024 * 1024, None


def _choose_layout(padded_total: int, itemsize: int, target_block_bytes: int):
    """Pick lane width Nw (divides padded_total), rows, and row-tile TM."""
    nw = _LANE
    for cand in (512, 256):
        if padded_total % cand == 0:
            nw = cand
            break
    rows = padded_total // nw

    # Row tile from the target block size; multiple of 32 (bf16/int8 sublane packing).
    tm = (target_block_bytes // (nw * itemsize)) // 32 * 32
    tm = max(32, tm)

    if rows < 64:
        # Tiny input: one full block (block dims == array dims, always legal).
        tm = rows
    elif tm >= rows:
        # Ensure >= 2 grid steps so the "parallel" axis can split across v7x cores.
        tm = max(32, (rows // 2) // 32 * 32)

    return nw, rows, tm


def custom_layer_forward(x: jax.Array, weight: jax.Array) -> jax.Array:
    """Elementwise scale by a scalar parameter (torch: x * self.weight)."""
    orig_shape = x.shape
    dtype = x.dtype
    total = int(x.size)
    if total == 0:
        return x
    itemsize = jnp.dtype(dtype).itemsize

    target_block_bytes, vmem_limit = _chip_config()

    padded_total = -(-total // _LANE) * _LANE        # only != total if total % 128 != 0
    nw, rows, tm = _choose_layout(padded_total, itemsize, target_block_bytes)

    x_flat = x.reshape(-1)                            # contiguous reshape: free
    needs_pad = padded_total != total
    if needs_pad:
        x_flat = jnp.pad(x_flat, (0, padded_total - total))
    x2d = x_flat.reshape(rows, nw)

    # Scalar weight lives in SMEM as a (1, 1) f32 array.
    w2d = weight.reshape(1, 1).astype(jnp.float32)

    grid = (pl.cdiv(rows, tm),)                       # partial last block handled by Pallas

    cp_kwargs = dict(dimension_semantics=("parallel",))
    if vmem_limit is not None:
        cp_kwargs["vmem_limit_bytes"] = vmem_limit

    out2d = pl.pallas_call(
        _scale_kernel,
        out_shape=jax.ShapeDtypeStruct((rows, nw), dtype),
        grid=grid,
        in_specs=[
            pl.BlockSpec(memory_space=pltpu.MemorySpace.SMEM),  # scalar weight
            pl.BlockSpec((tm, nw), lambda i: (i, 0)),           # lane-dense tile
        ],
        out_specs=pl.BlockSpec((tm, nw), lambda i: (i, 0)),
        compiler_params=pltpu.CompilerParams(**cp_kwargs),
        cost_estimate=pl.CostEstimate(
            flops=padded_total,
            transcendentals=0,
            bytes_accessed=2 * padded_total * itemsize,
        ),
    )(w2d, x2d)

    out_flat = out2d.reshape(-1)
    if needs_pad:
        out_flat = out_flat[:total]
    return out_flat.reshape(orig_shape)


if __name__ == "__main__":
    key = jax.random.PRNGKey(0)
    k_x, k_w, k_x2 = jax.random.split(key, 3)

    # Small NCHW-style input consistent with an elementwise module.
    x = jax.random.normal(k_x, (2, 4, 16, 16), dtype=jnp.float32)
    # Deterministic init of the single-element weight (torch.randn(1) analogue).
    weight = jax.random.normal(k_w, (1,), dtype=jnp.float32)

    y = custom_layer_forward(x, weight)
    jax.block_until_ready(y)
    ref = x * weight[0]
    assert y.shape == x.shape and y.dtype == x.dtype
    assert jnp.allclose(y, ref, atol=1e-6, rtol=1e-6), "mismatch vs reference"

    # Exercise the (rare) padded fallback path: total not a multiple of 128.
    x2 = jax.random.normal(k_x2, (3, 5, 7), dtype=jnp.float32)
    y2 = custom_layer_forward(x2, weight)
    jax.block_until_ready(y2)
    ref2 = x2 * weight[0]
    assert y2.shape == x2.shape and y2.dtype == x2.dtype
    assert jnp.allclose(y2, ref2, atol=1e-6, rtol=1e-6), "mismatch vs reference (padded path)"

    print("KERNEL_OK")
</pallas_src>

<mosaic_0001>
module attributes {stable_mosaic.version = 11 : i64} {
  func.func @_scale_kernel(%arg0: i32, %arg1: memref<1x1xf32, #tpu.memory_space<smem>>, %arg2: memref<4x512xf32, #tpu.memory_space<vmem>>, %arg3: memref<4x512xf32, #tpu.memory_space<vmem>>) attributes {dimension_semantics = [#tpu.dimension_semantics<parallel>], iteration_bounds = array<i64: 1>, scalar_prefetch = 0 : i64, scratch_operands = 0 : i64, tpu.core_type = #tpu.core_type<tc>, window_params = [{transform_indices = @transform_0, window_bounds = array<i64: 1, 1>}, {transform_indices = @transform_1, window_bounds = array<i64: 4, 512>}, {transform_indices = @transform_2, window_bounds = array<i64: 4, 512>}]} {
    %c0 = arith.constant 0 : index
    %c0_0 = arith.constant 0 : index
    %0 = memref.load %arg1[%c0, %c0_0] : memref<1x1xf32, #tpu.memory_space<smem>>
    %c0_1 = arith.constant 0 : index
    %c0_2 = arith.constant 0 : index
    %1 = vector.load %arg2[%c0_1, %c0_2] : memref<4x512xf32, #tpu.memory_space<vmem>>, vector<4x512xf32>
    %2 = vector.broadcast %0 : f32 to vector<4x512xf32>
    %3 = arith.mulf %1, %2 : vector<4x512xf32>
    %c0_3 = arith.constant 0 : index
    %c0_4 = arith.constant 0 : index
    %4 = vector.load %arg3[%c0_3, %c0_4] : memref<4x512xf32, #tpu.memory_space<vmem>>, vector<4x512xf32>
    tpu.vector_store %arg3[%c0_3, %c0_4], %3 {strides = array<i32>} : memref<4x512xf32, #tpu.memory_space<vmem>>, vector<4x512xf32>,
    return
  }
  func.func @transform_0(%arg0: i32) -> (i32, i32) {
    %c0_i32 = arith.constant 0 : i32
    %c0_i32_0 = arith.constant 0 : i32
    %c0_i32_1 = arith.constant 0 : i32
    return %c0_i32, %c0_i32_0 : i32, i32
  }
  func.func @transform_1(%arg0: i32) -> (i32, i32) {
    %c0_i32 = arith.constant 0 : i32
    %c0_i32_0 = arith.constant 0 : i32
    return %arg0, %c0_i32 : i32, i32
  }
  func.func @transform_2(%arg0: i32) -> (i32, i32) {
    %c0_i32 = arith.constant 0 : i32
    %c0_i32_0 = arith.constant 0 : i32
    return %arg0, %c0_i32 : i32, i32
  }
}

</mosaic_0001>

<llo_original>
// kernel: tpu_custom_call.1
$region0: #{tpu_custom_call.1}
  #allocation0 [shape = 'u32[]', space=smem, size = 0x4, offset = 0x4, fixed_abs, tag = 'smem constant byte address 0x4 - core index']
  #allocation1 [shape = 'u32[72,128]{1,0:T(1,128)}', space=vmem, size = 0x9000, scoped, tag = 'internal scratch']
  #allocation2 [shape = 'f32[1,1]{1,0:T(1,128)S(6)}', space=smem, size = 0x200, scoped, tag = 'scoped memory for tpu_custom_call.1']
  %s0 = inlined_call_operand.<no memory space> [shape: f32[1,1], index: 0, kind: input, shape index: {}]
  %s1 = inlined_call_operand.hbm [shape: f32[4,512], index: 1, kind: input, shape index: {}]
  %s2 = inlined_call_operand.hbm [shape: f32[4,512], index: 2, kind: output, shape index: {}]
  %s3 = sld [smem:[#allocation0]]
  $region22: #{tpu_custom_call.1} parent=0
    _
  %s5 = ssub.s32 1, %s3
  %s6 = scalar_select 0, %s5, %s3
  %7 = sst [smem:[#allocation2]] %s0
  $region1: #{tpu_custom_call.1} parent=0
    #allocation3 [shape = 'u8[8192]{0}', space=vmem, size = 0x2000, scoped, tag = 'input window, operand 1, single buffered']
    #allocation4 [shape = 's32[1]{0}', space=sflag, size = 0x4, scoped, tag = 'scoped memory for tpu_custom_call.1']
    #allocation5 [shape = 's32[1]{0}', space=sflag, size = 0x4, scoped, tag = 'scoped memory for tpu_custom_call.1']
    #allocation6 [shape = 'u8[8192]{0}', space=vmem, size = 0x2000, scoped, tag = 'output window, operand 0, single buffered']
    %8 = vsyncpa [#allocation4], 0
    %9 = vsyncpa [#allocation5], 0
    // Predicated region
    $region2: #{tpu_custom_call.1} parent=1 // pred_check
      _
    $region3: #{tpu_custom_call.1} parent=1 // pred_check_branch
      %11 = sbr.rel (0) target = $region5
    $region4: #{tpu_custom_call.1} parent=1 // pred_region
      _
    $region5: #{tpu_custom_call.1} parent=1 // pred_fallthru
      _
    // Predicated region
    $region6: #{tpu_custom_call.1} parent=1 // pred_check
      _
    $region7: #{tpu_custom_call.1} parent=1 // pred_check_branch
      %13 = sbr.rel (0) target = $region9
    $region8: #{tpu_custom_call.1} parent=1 // pred_region
      %15 = vsyncadd [#allocation4], 0
      %s17 = sshll.u32 %s1, 4
      %s18 = int_to_ptr.hbm [resolvable:$true] %s17
      %s19 = sshll.u32 [#allocation3], 4
      %s20 = int_to_ptr.vmem [resolvable:$true] %s19
      %22 = dma.hbm_to_vmem [thread:$0]  %s18, 256, %s20, [#allocation4]
    $region9: #{tpu_custom_call.1} parent=1 // pred_fallthru
      _
    // Predicated region
    $region10: #{tpu_custom_call.1} parent=1 // pred_check
      _
    $region11: #{tpu_custom_call.1} parent=1 // pred_check_branch
      %24 = sbr.rel (0) target = $region13
    $region12: #{tpu_custom_call.1} parent=1 // pred_region
      %26 = dma.done [#allocation4], 256
    $region13: #{tpu_custom_call.1} parent=1 // pred_fallthru
      _
    %s27 = sld [smem:[#allocation2]]
    %v28 = vld [vmem:[#allocation3] sm:$0xff]
    %v29 = vld [vmem:[#allocation3 + $0x8] sm:$0xff]
    %v30 = vstv %s27
    %v31 = vmul.f32 %v28, %v30
    %v32 = vmul.f32 %v29, %v30
    %33 = vst [vmem:[#allocation6] sm:$0xff] %v31
    %34 = vst [vmem:[#allocation6 + $0x8] sm:$0xff] %v32
    // Predicated region
    $region14: #{tpu_custom_call.1} parent=1 // pred_check
      _
    $region15: #{tpu_custom_call.1} parent=1 // pred_check_branch
      %36 = sbr.rel (0) target = $region17
    $region16: #{tpu_custom_call.1} parent=1 // pred_region
      %38 = vsyncadd [#allocation5], 0
      %s40 = sshll.u32 [#allocation6], 4
      %s41 = int_to_ptr.vmem [resolvable:$true] %s40
      %s42 = sshll.u32 %s2, 4
      %s43 = int_to_ptr.hbm [resolvable:$true] %s42
      %45 = dma.vmem_to_hbm [thread:$0]  %s41, 256, %s43, [#allocation5]
    $region17: #{tpu_custom_call.1} parent=1 // pred_fallthru
      _
    // Predicated region
    $region18: #{tpu_custom_call.1} parent=1 // pred_check
      _
    $region19: #{tpu_custom_call.1} parent=1 // pred_check_branch
      %47 = sbr.rel (0) target = $region21
    $region20: #{tpu_custom_call.1} parent=1 // pred_region
      %49 = dma.done [#allocation5], 256
    $region21: #{tpu_custom_call.1} parent=1 // pred_fallthru
      _
    %50 = vsyncpa [#allocation4], 1
    %51 = vsyncpa [#allocation5], 1

</llo_original>
